<compile_context>
chip_gen: v5e
topology: v5e:2x2
jax: 0.10.0
libtpu: 0.0.40
codegen_flags: <defaults>
</compile_context>

<pallas_src>
import jax
import jax.numpy as jnp
from jax.experimental import pallas as pl
from jax.experimental.pallas import tpu as pltpu


def _sigmoid(z):
    # sigmoid(z) = 0.5 * (1 + tanh(z/2)): tanh runs on the EUP slot and is
    # numerically stable for large |z| (no exp overflow, no VPU divide).
    return 0.5 * (jnp.tanh(0.5 * z) + 1.0)


def _erf(z):
    # Abramowitz & Stegun 7.1.26 rational approximation (|err| < 1.5e-7),
    # built only from exp / mul / add / select so it always lowers on Mosaic.
    p = 0.3275911
    a1, a2, a3, a4, a5 = (0.254829592, -0.284496736, 1.421413741,
                          -1.453152027, 1.061405429)
    sgn = jnp.where(z < 0.0, -1.0, 1.0)
    az = jnp.abs(z)
    t = 1.0 / (1.0 + p * az)
    poly = ((((a5 * t + a4) * t + a3) * t + a2) * t + a1) * t
    return sgn * (1.0 - poly * jnp.exp(-az * az))


def _gelu_exact(z):
    # Matches PyTorch nn.GELU() default (erf form), not the tanh approximation.
    return 0.5 * z * (1.0 + _erf(z * 0.7071067811865476))


def se_kernel(x_ref, w1_ref, w2_ref, o_ref):
    # x_ref/o_ref: (Bblk, C, S);  w1_ref: (C, Ch);  w2_ref: (Ch, C)
    x = x_ref[...]                                   # (Bblk, C, S) float32

    # Squeeze: global average pool over spatial positions (lane reduction, XLU).
    y = jnp.mean(x, axis=-1)                         # (Bblk, C)

    # Excitation: Linear -> GELU -> Linear -> Sigmoid.
    h = _gelu_exact(jnp.dot(y, w1_ref[...],
                            preferred_element_type=jnp.float32))    # (Bblk, Ch)
    s = _sigmoid(jnp.dot(h, w2_ref[...],
                         preferred_element_type=jnp.float32))       # (Bblk, C)

    # Scale: broadcast the per-(batch, channel) gate across the lane axis.
    o_ref[...] = (x * s[:, :, None]).astype(o_ref.dtype)


def se_pallas(x_nchw, w_fc1, w_fc2, *, block_b=8):
    """x_nchw: (B, C, H, W); w_fc1: (C//r, C); w_fc2: (C, C//r) (PyTorch Linear weights)."""
    B, C, H, W = x_nchw.shape
    S = H * W
    Ch = w_fc1.shape[0]

    # No NCHW<->NHWC transpose (and no HBM round trip for it): just collapse
    # H,W onto the lane axis.
    x = x_nchw.reshape(B, C, S).astype(jnp.float32)
    w1 = jnp.asarray(w_fc1, jnp.float32).T           # (C, Ch)
    w2 = jnp.asarray(w_fc2, jnp.float32).T           # (Ch, C)

    bb = min(block_b, B)
    grid = (pl.cdiv(B, bb),)

    out = pl.pallas_call(
        se_kernel,
        out_shape=jax.ShapeDtypeStruct((B, C, S), jnp.float32),
        grid=grid,
        in_specs=[
            pl.BlockSpec((bb, C, S), lambda b: (b, 0, 0)),
            pl.BlockSpec((C, Ch), lambda b: (0, 0)),
            pl.BlockSpec((Ch, C), lambda b: (0, 0)),
        ],
        out_specs=pl.BlockSpec((bb, C, S), lambda b: (b, 0, 0)),
        compiler_params=pltpu.CompilerParams(dimension_semantics=("parallel",)),
    )(x, w1, w2)

    return out.reshape(B, C, H, W)


def se_ref(x, w_fc1, w_fc2):
    """Pure-JAX reference mirroring the PyTorch SELayer forward (NCHW)."""
    y = jnp.mean(x, axis=(2, 3))                         # (B, C)
    h = jax.nn.gelu(y @ w_fc1.T, approximate=False)      # exact GELU like nn.GELU()
    s = jax.nn.sigmoid(h @ w_fc2.T)                      # (B, C)
    return x * s[:, :, None, None]


if __name__ == "__main__":
    key = jax.random.PRNGKey(0)
    kx, k1, k2 = jax.random.split(key, 3)

    # SELayer uses channel // 16 internally, so channels must be >= 16.
    B, C, H, W = 2, 32, 16, 16
    Ch = C // 16

    x = jax.random.normal(kx, (B, C, H, W), jnp.float32)
    w_fc1 = 0.3 * jax.random.normal(k1, (Ch, C), jnp.float32)   # nn.Linear(C, C//16, bias=False).weight
    w_fc2 = 0.3 * jax.random.normal(k2, (C, Ch), jnp.float32)   # nn.Linear(C//16, C, bias=False).weight

    out = se_pallas(x, w_fc1, w_fc2)
    out = jax.block_until_ready(out)

    ref = se_ref(x, w_fc1, w_fc2)
    err = float(jnp.max(jnp.abs(out - ref)))
    assert err < 1e-2, f"max abs error too large: {err}"
    print("KERNEL_OK")
</pallas_src>

<mosaic_0001>
module attributes {stable_mosaic.version = 11 : i64} {
  func.func @se_kernel(%arg0: i32, %arg1: memref<2x32x256xf32, #tpu.memory_space<vmem>>, %arg2: memref<32x2xf32, #tpu.memory_space<vmem>>, %arg3: memref<2x32xf32, #tpu.memory_space<vmem>>, %arg4: memref<2x32x256xf32, #tpu.memory_space<vmem>>) attributes {dimension_semantics = [#tpu.dimension_semantics<parallel>], iteration_bounds = array<i64: 1>, scalar_prefetch = 0 : i64, scratch_operands = 0 : i64, tpu.core_type = #tpu.core_type<tc>, window_params = [{transform_indices = @transform_0, window_bounds = array<i64: 2, 32, 256>}, {pipeline_mode = #tpu.pipeline_mode<synchronous>, transform_indices = @transform_1, window_bounds = array<i64: 32, 2>}, {pipeline_mode = #tpu.pipeline_mode<synchronous>, transform_indices = @transform_2, window_bounds = array<i64: 2, 32>}, {transform_indices = @transform_3, window_bounds = array<i64: 2, 32, 256>}]} {
    %c0 = arith.constant 0 : index
    %c0_0 = arith.constant 0 : index
    %c0_1 = arith.constant 0 : index
    %0 = vector.load %arg1[%c0, %c0_0, %c0_1] : memref<2x32x256xf32, #tpu.memory_space<vmem>>, vector<2x32x256xf32>
    %cst = arith.constant dense<0.000000e+00> : vector<2x32xf32>
    %1 = vector.multi_reduction <add>, %0, %cst [2] : vector<2x32x256xf32> to vector<2x32xf32>
    %cst_2 = arith.constant 2.560000e+02 : f32
    %2 = vector.broadcast %cst_2 : f32 to vector<2x32xf32>
    %3 = arith.divf %1, %2 : vector<2x32xf32>
    %c0_3 = arith.constant 0 : index
    %c0_4 = arith.constant 0 : index
    %4 = vector.load %arg2[%c0_3, %c0_4] : memref<32x2xf32, #tpu.memory_space<vmem>>, vector<32x2xf32>
    %cst_5 = arith.constant dense<0.000000e+00> : vector<2x2xf32>
    %5 = tpu.matmul %3, %4, %cst_5 {dimension_numbers = #tpu.dot_dimension_numbers<[1], [0], [0], [1], [0, 0, 1, 1], [], []>} : vector<2x32xf32>, vector<32x2xf32>, vector<2x2xf32> -> vector<2x2xf32>
    %cst_6 = arith.constant 5.000000e-01 : f32
    %6 = vector.broadcast %cst_6 : f32 to vector<2x2xf32>
    %7 = arith.mulf %6, %5 : vector<2x2xf32>
    %cst_7 = arith.constant 0.707106769 : f32
    %8 = vector.broadcast %cst_7 : f32 to vector<2x2xf32>
    %9 = arith.mulf %5, %8 : vector<2x2xf32>
    %cst_8 = arith.constant 0.000000e+00 : f32
    %10 = vector.broadcast %cst_8 : f32 to vector<2x2xf32>
    %11 = arith.cmpf olt, %9, %10 : vector<2x2xf32>
    %cst_9 = arith.constant -1.000000e+00 : f32
    %cst_10 = arith.constant 1.000000e+00 : f32
    %12 = vector.broadcast %cst_9 : f32 to vector<2x2xf32>
    %13 = vector.broadcast %cst_10 : f32 to vector<2x2xf32>
    %14 = arith.select %11, %12, %13 : vector<2x2xi1>, vector<2x2xf32>
    %15 = math.absf %9 : vector<2x2xf32>
    %cst_11 = arith.constant 0.327591091 : f32
    %16 = vector.broadcast %cst_11 : f32 to vector<2x2xf32>
    %17 = arith.mulf %16, %15 : vector<2x2xf32>
    %cst_12 = arith.constant 1.000000e+00 : f32
    %18 = vector.broadcast %cst_12 : f32 to vector<2x2xf32>
    %19 = arith.addf %18, %17 : vector<2x2xf32>
    %cst_13 = arith.constant 1.000000e+00 : f32
    %20 = vector.broadcast %cst_13 : f32 to vector<2x2xf32>
    %21 = arith.divf %20, %19 : vector<2x2xf32>
    %cst_14 = arith.constant 1.06140542 : f32
    %22 = vector.broadcast %cst_14 : f32 to vector<2x2xf32>
    %23 = arith.mulf %22, %21 : vector<2x2xf32>
    %cst_15 = arith.constant -1.45315206 : f32
    %24 = vector.broadcast %cst_15 : f32 to vector<2x2xf32>
    %25 = arith.addf %23, %24 : vector<2x2xf32>
    %26 = arith.mulf %25, %21 : vector<2x2xf32>
    %cst_16 = arith.constant 1.42141378 : f32
    %27 = vector.broadcast %cst_16 : f32 to vector<2x2xf32>
    %28 = arith.addf %26, %27 : vector<2x2xf32>
    %29 = arith.mulf %28, %21 : vector<2x2xf32>
    %cst_17 = arith.constant -0.284496725 : f32
    %30 = vector.broadcast %cst_17 : f32 to vector<2x2xf32>
    %31 = arith.addf %29, %30 : vector<2x2xf32>
    %32 = arith.mulf %31, %21 : vector<2x2xf32>
    %cst_18 = arith.constant 0.254829586 : f32
    %33 = vector.broadcast %cst_18 : f32 to vector<2x2xf32>
    %34 = arith.addf %32, %33 : vector<2x2xf32>
    %35 = arith.mulf %34, %21 : vector<2x2xf32>
    %cst_19 = arith.constant 0.000000e+00 : f32
    %36 = vector.broadcast %cst_19 : f32 to vector<2x2xf32>
    %37 = arith.subf %36, %15 : vector<2x2xf32>
    %38 = arith.mulf %37, %15 : vector<2x2xf32>
    %39 = math.exp %38 : vector<2x2xf32>
    %40 = arith.mulf %35, %39 : vector<2x2xf32>
    %cst_20 = arith.constant 1.000000e+00 : f32
    %41 = vector.broadcast %cst_20 : f32 to vector<2x2xf32>
    %42 = arith.subf %41, %40 : vector<2x2xf32>
    %43 = arith.mulf %14, %42 : vector<2x2xf32>
    %cst_21 = arith.constant 1.000000e+00 : f32
    %44 = vector.broadcast %cst_21 : f32 to vector<2x2xf32>
    %45 = arith.addf %44, %43 : vector<2x2xf32>
    %46 = arith.mulf %7, %45 : vector<2x2xf32>
    %c0_22 = arith.constant 0 : index
    %c0_23 = arith.constant 0 : index
    %47 = vector.load %arg3[%c0_22, %c0_23] : memref<2x32xf32, #tpu.memory_space<vmem>>, vector<2x32xf32>
    %cst_24 = arith.constant dense<0.000000e+00> : vector<2x32xf32>
    %48 = tpu.matmul %46, %47, %cst_24 {dimension_numbers = #tpu.dot_dimension_numbers<[1], [0], [0], [1], [0, 0, 1, 1], [], []>} : vector<2x2xf32>, vector<2x32xf32>, vector<2x32xf32> -> vector<2x32xf32>
    %cst_25 = arith.constant 5.000000e-01 : f32
    %49 = vector.broadcast %cst_25 : f32 to vector<2x32xf32>
    %50 = arith.mulf %49, %48 : vector<2x32xf32>
    %51 = math.tanh %50 : vector<2x32xf32>
    %cst_26 = arith.constant 1.000000e+00 : f32
    %52 = vector.broadcast %cst_26 : f32 to vector<2x32xf32>
    %53 = arith.addf %51, %52 : vector<2x32xf32>
    %cst_27 = arith.constant 5.000000e-01 : f32
    %54 = vector.broadcast %cst_27 : f32 to vector<2x32xf32>
    %55 = arith.mulf %54, %53 : vector<2x32xf32>
    %56 = vector.shape_cast %55 : vector<2x32xf32> to vector<2x32x1xf32>
    %57 = vector.broadcast %56 : vector<2x32x1xf32> to vector<2x32x256xf32>
    %58 = arith.mulf %0, %57 : vector<2x32x256xf32>
    %c0_28 = arith.constant 0 : index
    %c0_29 = arith.constant 0 : index
    %c0_30 = arith.constant 0 : index
    %59 = vector.load %arg4[%c0_28, %c0_29, %c0_30] : memref<2x32x256xf32, #tpu.memory_space<vmem>>, vector<2x32x256xf32>
    tpu.vector_store %arg4[%c0_28, %c0_29, %c0_30], %58 {strides = array<i32>} : memref<2x32x256xf32, #tpu.memory_space<vmem>>, vector<2x32x256xf32>,
    return
  }
  func.func @transform_0(%arg0: i32) -> (i32, i32, i32) {
    %c0_i32 = arith.constant 0 : i32
    %c0_i32_0 = arith.constant 0 : i32
    %c0_i32_1 = arith.constant 0 : i32
    return %arg0, %c0_i32, %c0_i32_0 : i32, i32, i32
  }
  func.func @transform_1(%arg0: i32) -> (i32, i32) {
    %c0_i32 = arith.constant 0 : i32
    %c0_i32_0 = arith.constant 0 : i32
    %c0_i32_1 = arith.constant 0 : i32
    return %c0_i32, %c0_i32_0 : i32, i32
  }
  func.func @transform_2(%arg0: i32) -> (i32, i32) {
    %c0_i32 = arith.constant 0 : i32
    %c0_i32_0 = arith.constant 0 : i32
    %c0_i32_1 = arith.constant 0 : i32
    return %c0_i32, %c0_i32_0 : i32, i32
  }
  func.func @transform_3(%arg0: i32) -> (i32, i32, i32) {
    %c0_i32 = arith.constant 0 : i32
    %c0_i32_0 = arith.constant 0 : i32
    %c0_i32_1 = arith.constant 0 : i32
    return %arg0, %c0_i32, %c0_i32_0 : i32, i32, i32
  }
}

</mosaic_0001>

<llo_original>
// kernel: tpu_custom_call.1
$region0: #{tpu_custom_call.1}
  #allocation0 [shape = 'u32[]', space=smem, size = 0x4, offset = 0x4, fixed_abs, tag = 'smem constant byte address 0x4 - core index']
  #allocation1 [shape = 'u32[72,128]{1,0:T(1,128)}', space=vmem, size = 0x9000, scoped, tag = 'internal scratch']
  %s0 = inlined_call_operand.hbm [shape: f32[2,32,256], index: 0, kind: input, shape index: {}]
  %s1 = inlined_call_operand.vmem [shape: f32[32,2], index: 1, kind: input, shape index: {}]
  %s2 = inlined_call_operand.vmem [shape: f32[2,32], index: 2, kind: input, shape index: {}]
  %s3 = inlined_call_operand.hbm [shape: f32[2,32,256], index: 3, kind: output, shape index: {}]
  %s4 = sld [smem:[#allocation0]]
  $region26: #{tpu_custom_call.1} parent=0
    _
  %s6 = ssub.s32 1, %s4
  %s7 = scalar_select 0, %s6, %s4
  $region1: #{tpu_custom_call.1} parent=0
    #allocation2 [shape = 'u8[65536]{0}', space=vmem, size = 0x10000, scoped, tag = 'input window, operand 0, single buffered']
    #allocation3 [shape = 's32[1]{0}', space=sflag, size = 0x4, scoped, tag = 'scoped memory for tpu_custom_call.1']
    #allocation4 [shape = 's32[1]{0}', space=sflag, size = 0x4, scoped, tag = 'scoped memory for tpu_custom_call.1']
    #allocation5 [shape = 'u8[65536]{0}', space=vmem, size = 0x10000, scoped, tag = 'output window, operand 0, single buffered']
    %8 = vsyncpa [#allocation3], 0
    %9 = vsyncpa [#allocation4], 0
    // Predicated region
    $region2: #{tpu_custom_call.1} parent=1 // pred_check
      _
    $region3: #{tpu_custom_call.1} parent=1 // pred_check_branch
      %11 = sbr.rel (0) target = $region5
    $region4: #{tpu_custom_call.1} parent=1 // pred_region
      %13 = vsyncadd [#allocation3], 0
      %s14 = sshll.u32 %s0, 4
      %s15 = int_to_ptr.hbm [resolvable:$true] %s14
      %s16 = sshll.u32 [#allocation2], 4
      %s17 = int_to_ptr.vmem [resolvable:$true] %s16
      %22 = dma.hbm_to_vmem [thread:$0]  %s15, 2048, %s17, [#allocation3], 256, 256, 16
    $region5: #{tpu_custom_call.1} parent=1 // pred_fallthru
      _
    // Predicated region
    $region6: #{tpu_custom_call.1} parent=1 // pred_check
      _
    $region7: #{tpu_custom_call.1} parent=1 // pred_check_branch
      %24 = sbr.rel (0) target = $region9
    $region8: #{tpu_custom_call.1} parent=1 // pred_region
      _
    $region9: #{tpu_custom_call.1} parent=1 // pred_fallthru
      _
    // Predicated region
    $region10: #{tpu_custom_call.1} parent=1 // pred_check
      _
    $region11: #{tpu_custom_call.1} parent=1 // pred_check_branch
      %26 = sbr.rel (0) target = $region13
    $region12: #{tpu_custom_call.1} parent=1 // pred_region
      _
    $region13: #{tpu_custom_call.1} parent=1 // pred_fallthru
      _
    // Predicated region
    $region14: #{tpu_custom_call.1} parent=1 // pred_check
      _
    $region15: #{tpu_custom_call.1} parent=1 // pred_check_branch
      %28 = sbr.rel (0) target = $region17
    $region16: #{tpu_custom_call.1} parent=1 // pred_region
      %30 = dma.done [#allocation3], 2048
    $region17: #{tpu_custom_call.1} parent=1 // pred_fallthru
      _
    %v31 = vld [vmem:[#allocation2] sm:$0xff]
    %v32 = vld [vmem:[#allocation2 + $0x8] sm:$0xff]
    %v33 = vld [vmem:[#allocation2 + $0x10] sm:$0xff]
    %v34 = vld [vmem:[#allocation2 + $0x18] sm:$0xff]
    %v35 = vld [vmem:[#allocation2 + $0x20] sm:$0xff]
    %v36 = vld [vmem:[#allocation2 + $0x28] sm:$0xff]
    %v37 = vld [vmem:[#allocation2 + $0x30] sm:$0xff]
    %v38 = vld [vmem:[#allocation2 + $0x38] sm:$0xff]
    %v39 = vld [vmem:[#allocation2 + $0x40] sm:$0xff]
    %v40 = vld [vmem:[#allocation2 + $0x48] sm:$0xff]
    %v41 = vld [vmem:[#allocation2 + $0x50] sm:$0xff]
    %v42 = vld [vmem:[#allocation2 + $0x58] sm:$0xff]
    %v43 = vld [vmem:[#allocation2 + $0x60] sm:$0xff]
    %v44 = vld [vmem:[#allocation2 + $0x68] sm:$0xff]
    %v45 = vld [vmem:[#allocation2 + $0x70] sm:$0xff]
    %v46 = vld [vmem:[#allocation2 + $0x78] sm:$0xff]
    %v47 = vadd.f32 %v31, %v32
    %48 = vadd.xlane.f32.xlu0 %v47
    %v49 = vpop.xlane.xlu0 %48
    %v50 = vadd.f32 %v33, %v34
    %51 = vadd.xlane.f32.xlu0 %v50
    %v52 = vpop.xlane.xlu0 %51
    %v53 = vadd.f32 %v35, %v36
    %54 = vadd.xlane.f32.xlu0 %v53
    %v55 = vpop.xlane.xlu0 %54
    %v56 = vadd.f32 %v37, %v38
    %57 = vadd.xlane.f32.xlu0 %v56
    %v58 = vpop.xlane.xlu0 %57
    %v59 = vadd.f32 %v39, %v40
    %60 = vadd.xlane.f32.xlu0 %v59
    %v61 = vpop.xlane.xlu0 %60
    %v62 = vadd.f32 %v41, %v42
    %63 = vadd.xlane.f32.xlu0 %v62
    %v64 = vpop.xlane.xlu0 %63
    %v65 = vadd.f32 %v43, %v44
    %66 = vadd.xlane.f32.xlu0 %v65
    %v67 = vpop.xlane.xlu0 %66
    %v68 = vadd.f32 %v45, %v46
    %69 = vadd.xlane.f32.xlu0 %v68
    %v70 = vpop.xlane.xlu0 %69
    %v71 = vrcp.pop 256.0
    %v72 = vmul.f32 256.0, %v71
    %v73 = vsub.f32 1.0, %v72
    %v74 = vmul.f32 %v71, %v73
    %v75 = vadd.f32 %v71, %v74
    %vm76 = vweird.f32 %v71
    %v77 = vsel %vm76, %v71, %v75
    %v78 = vmul.f32 %v49, %v77
    %v79 = vmul.f32 %v52, %v77
    %v80 = vmul.f32 %v55, %v77
    %v81 = vmul.f32 %v58, %v77
    %v82 = vmul.f32 %v61, %v77
    %v83 = vmul.f32 %v64, %v77
    %v84 = vmul.f32 %v67, %v77
    %v85 = vmul.f32 %v70, %v77
    %v86 = vld [vmem:[%s1] sm:$0xff]
    %v87 = vld [vmem:[%s1 + $0x8] sm:$0xff]
    %v88 = vld [vmem:[%s1 + $0x10] sm:$0xff]
    %v89 = vld [vmem:[%s1 + $0x18] sm:$0xff]
    %v98 = vlaneseq
    %v99 = vand.u32 %v98, 127
    %v100 = vperm.slane %v78, %v99
    %v101 = vadd.s32 %v99, 4294967288
    %v102 = vperm.slane %v79, %v101
    %vm103 = vcmask 130112
    %v104 = vsel %vm103, %v102, %v100
    %v105 = vadd.s32 %v99, 4294967280
    %v106 = vperm.slane %v80, %v105
    %vm107 = vcmask 195712
    %v108 = vsel %vm107, %v106, %v104
    %v109 = vadd.s32 %v99, 4294967272
    %v110 = vperm.slane %v81, %v109
    %vm111 = vcmask 261312
    %v112 = vsel %vm111, %v110, %v108
    %v113 = vperm.slane %v82, %v99
    %v114 = vperm.slane %v83, %v101
    %v115 = vsel %vm103, %v114, %v113
    %v116 = vperm.slane %v84, %v105
    %v117 = vsel %vm107, %v116, %v115
    %v118 = vperm.slane %v85, %v109
    %v119 = vsel %vm111, %v118, %v117
    %vm120 = vcmask 1041409
    %v121 = vsel %vm120, %v119, %v112
    %vm122 = vcmask 261120
    %v123 = vsel %vm122, %v121, 0
    %125 = vmatpush.msra.mxu0 0.0
    %126 = vmatpush.msra.mxu0 0.0
    %127 = vmatpush.msra.mxu0 0.0
    %128 = vmatpush.msra.mxu0 0.0
    %129 = vmatpush.msra.mxu0 0.0
    %130 = vmatpush.msra.mxu0 0.0
    %131 = vmatpush.msra.mxu0 0.0
    %132 = vmatpush.msra.mxu0 0.0
    %133 = vmatpush.msra.mxu0 0.0
    %134 = vmatpush.msra.mxu0 0.0
    %135 = vmatpush.msra.mxu0 0.0
    %136 = vmatpush.msra.mxu0 0.0
    %137 = vmatpush.msra.mxu0 %v89
    %138 = vmatpush.msra.mxu0 %v88
    %139 = vmatpush.msra.mxu0 %v87
    %140 = vmatpush.msra.mxu0 %v86
    %141 = vmatmul.f32.gmra.mxu0 %v123
    %v142 = vpop.f32.mrf.mxu0
    %v143 = vadd.f32 0.0, %v142
    %144 = vdwg.mxu0
    %v145 = vmul.f32 %v143, 0.5
    %v146 = vmul.f32 %v143, 0.70710677
    %vm147 = vcmp.lt.f32.partialorder %v146, 0.0
    %v148 = vsel %vm147, -1.0, 1.0
    %v149 = vand.u32 2147483647, %v146
    %v150 = vmul.f32 %v149, 0.3275911
    %v151 = vadd.f32 %v150, 1.0
    %v152 = vrcp.pop %v151
    %v153 = vmul.f32 %v151, %v152
    %v154 = vsub.f32 1.0, %v153
    %v155 = vmul.f32 %v152, %v154
    %v156 = vadd.f32 %v152, %v155
    %vm157 = vweird.f32 %v151
    %vm158 = vweird.f32 %v152
    %vm159 = vmor %vm157, %vm158
    %v160 = vsel %vm159, %v152, %v156
    %v161 = vand.u32 2147483647, %v151
    %vm162 = vcmp.eq.f32.partialorder %v161, 8.507059e+37
    %v163 = vand.u32 %v151, 2147483648
    %v164 = vor.u32 1.1754944e-38, %v163
    %v165 = vsel %vm162, %v164, %v160
    %v166 = vmul.f32 1.0, %v165
    %v167 = vmul.f32 %v166, 1.0614054
    %v168 = vadd.f32 %v167, -1.4531521
    %v169 = vmul.f32 %v168, %v166
    %v170 = vadd.f32 %v169, 1.4214138
    %v171 = vmul.f32 %v170, %v166
    %v172 = vadd.f32 %v171, -0.28449672
    %v173 = vmul.f32 %v172, %v166
    %v174 = vadd.f32 %v173, 0.2548296
    %v175 = vmul.f32 %v174, %v166
    %v176 = vsub.f32 0.0, %v149
    %v177 = vmul.f32 %v176, %v149
    %v178 = vmul.f32 %v177, 1.442695
    %v179 = vpow.pop %v178
    %v180 = vmul.f32 %v175, %v179
    %v181 = vsub.f32 1.0, %v180
    %v182 = vmul.f32 %v148, %v181
    %v183 = vadd.f32 %v182, 1.0
    %v184 = vmul.f32 %v145, %v183
    %v185 = vld [vmem:[%s2] sm:$0x3]
    %vm186 = vcmask 15360
    %v188 = vsel %vm186, %v184, 0
    %vm190 = vcmask 1041408
    %v192 = vsel %vm190, %v185, 0
    %194 = vmatpush.msra.mxu0 0.0
    %195 = vmatpush.msra.mxu0 0.0
    %196 = vmatpush.msra.mxu0 0.0
    %197 = vmatpush.msra.mxu0 0.0
    %198 = vmatpush.msra.mxu0 0.0
    %199 = vmatpush.msra.mxu0 0.0
    %200 = vmatpush.msra.mxu0 0.0
    %201 = vmatpush.msra.mxu0 0.0
    %202 = vmatpush.msra.mxu0 0.0
    %203 = vmatpush.msra.mxu0 0.0
    %204 = vmatpush.msra.mxu0 0.0
    %205 = vmatpush.msra.mxu0 0.0
    %206 = vmatpush.msra.mxu0 0.0
    %207 = vmatpush.msra.mxu0 0.0
    %208 = vmatpush.msra.mxu0 0.0
    %209 = vmatpush.msra.mxu0 %v192
    %210 = vmatmul.f32.gmra.mxu0 %v188
    %v211 = vpop.f32.mrf.mxu0
    %v212 = vadd.f32 0.0, %v211
    %213 = vdwg.mxu0
    %v214 = vmul.f32 %v212, 0.5
    %v215 = vtanh.pop %v214
    %v216 = vadd.f32 %v215, 1.0
    %v217 = vmul.f32 %v216, 0.5
    %v218 = vperm.slane %v217, 0
    %v219 = vlaneseq
    %v220 = vshrl.u32 %v219, 7
    %222 = vset.pattern.permute.xlu0 %v220
    %223 = vperm.xlu0 %222, %v218
    %v224 = vpop.permute.xlu0 %223
    %v225 = vlaneseq
    %v226 = vshrl.u32 %v225, 7
    %v227 = vadd.s32 %v226, 8
    %228 = vset.pattern.permute.xlu0 %v227
    %229 = vperm.xlu0 %228, %v218
    %v230 = vpop.permute.xlu0 %229
    %v231 = vlaneseq
    %v232 = vshrl.u32 %v231, 7
    %v233 = vadd.s32 %v232, 16
    %234 = vset.pattern.permute.xlu0 %v233
    %235 = vperm.xlu0 %234, %v218
    %v236 = vpop.permute.xlu0 %235
    %v237 = vlaneseq
    %v238 = vshrl.u32 %v237, 7
    %v239 = vadd.s32 %v238, 24
    %240 = vset.pattern.permute.xlu0 %v239
    %241 = vperm.xlu0 %240, %v218
    %v242 = vpop.permute.xlu0 %241
    %v243 = vperm.slane %v217, 1
    %v244 = vlaneseq
    %v245 = vshrl.u32 %v244, 7
    %247 = vset.pattern.permute.xlu0 %v245
    %248 = vperm.xlu0 %247, %v243
    %v249 = vpop.permute.xlu0 %248
    %v250 = vlaneseq
    %v251 = vshrl.u32 %v250, 7
    %v252 = vadd.s32 %v251, 8
    %253 = vset.pattern.permute.xlu0 %v252
    %254 = vperm.xlu0 %253, %v243
    %v255 = vpop.permute.xlu0 %254
    %v256 = vlaneseq
    %v257 = vshrl.u32 %v256, 7
    %v258 = vadd.s32 %v257, 16
    %259 = vset.pattern.permute.xlu0 %v258
    %260 = vperm.xlu0 %259, %v243
    %v261 = vpop.permute.xlu0 %260
    %v262 = vlaneseq
    %v263 = vshrl.u32 %v262, 7
    %v264 = vadd.s32 %v263, 24
    %265 = vset.pattern.permute.xlu0 %v264
    %266 = vperm.xlu0 %265, %v243
    %v267 = vpop.permute.xlu0 %266
    %v268 = vmul.f32 %v31, %v224
    %v269 = vmul.f32 %v32, %v224
    %v270 = vmul.f32 %v33, %v230
    %v271 = vmul.f32 %v34, %v230
    %v272 = vmul.f32 %v35, %v236
    %v273 = vmul.f32 %v36, %v236
    %v274 = vmul.f32 %v37, %v242
    %v275 = vmul.f32 %v38, %v242
    %v276 = vmul.f32 %v39, %v249
    %v277 = vmul.f32 %v40, %v249
    %v278 = vmul.f32 %v41, %v255
    %v279 = vmul.f32 %v42, %v255
    %v280 = vmul.f32 %v43, %v261
    %v281 = vmul.f32 %v44, %v261
    %v282 = vmul.f32 %v45, %v267
    %v283 = vmul.f32 %v46, %v267
    %284 = vst [vmem:[#allocation5] sm:$0xff] %v268
    %285 = vst [vmem:[#allocation5 + $0x8] sm:$0xff] %v269
    %286 = vst [vmem:[#allocation5 + $0x10] sm:$0xff] %v270
    %287 = vst [vmem:[#allocation5 + $0x18] sm:$0xff] %v271
    %288 = vst [vmem:[#allocation5 + $0x20] sm:$0xff] %v272
    %289 = vst [vmem:[#allocation5 + $0x28] sm:$0xff] %v273
    %290 = vst [vmem:[#allocation5 + $0x30] sm:$0xff] %v274
    %291 = vst [vmem:[#allocation5 + $0x38] sm:$0xff] %v275
    %292 = vst [vmem:[#allocation5 + $0x40] sm:$0xff] %v276
    %293 = vst [vmem:[#allocation5 + $0x48] sm:$0xff] %v277
    %294 = vst [vmem:[#allocation5 + $0x50] sm:$0xff] %v278
    %295 = vst [vmem:[#allocation5 + $0x58] sm:$0xff] %v279
    %296 = vst [vmem:[#allocation5 + $0x60] sm:$0xff] %v280
    %297 = vst [vmem:[#allocation5 + $0x68] sm:$0xff] %v281
    %298 = vst [vmem:[#allocation5 + $0x70] sm:$0xff] %v282
    %299 = vst [vmem:[#allocation5 + $0x78] sm:$0xff] %v283
    // Predicated region
    $region18: #{tpu_custom_call.1} parent=1 // pred_check
      _
    $region19: #{tpu_custom_call.1} parent=1 // pred_check_branch
      %301 = sbr.rel (0) target = $region21
    $region20: #{tpu_custom_call.1} parent=1 // pred_region
      %303 = vsyncadd [#allocation4], 0
      %s304 = sshll.u32 [#allocation5], 4
      %s305 = int_to_ptr.vmem [resolvable:$true] %s304
      %s306 = sshll.u32 %s3, 4
      %s307 = int_to_ptr.hbm [resolvable:$true] %s306
      %312 = dma.vmem_to_hbm [thread:$0]  %s305, 2048, %s307, [#allocation4], 256, 256, 16
    $region21: #{tpu_custom_call.1} parent=1 // pred_fallthru
      _
    // Predicated region
    $region22: #{tpu_custom_call.1} parent=1 // pred_check
      _
    $region23: #{tpu_custom_call.1} parent=1 // pred_check_branch
      %314 = sbr.rel (0) target = $region25
    $region24: #{tpu_custom_call.1} parent=1 // pred_region
      %316 = dma.done [#allocation4], 2048
    $region25: #{tpu_custom_call.1} parent=1 // pred_fallthru
      _
    %317 = vsyncpa [#allocation3], 1
    %318 = vsyncpa [#allocation4], 1

</llo_original>
